<compile_context>
chip_gen: v5e
topology: v5e:2x2
jax: 0.10.0
libtpu: 0.0.40
codegen_flags: <defaults>
</compile_context>

<pallas_src>
import functools

import jax
import jax.numpy as jnp
from jax.experimental import pallas as pl
from jax.experimental.pallas import tpu as pltpu


def _round_up(n, m):
    return ((n + m - 1) // m) * m


# ---------------------------------------------------------------------------
# Probe: is BlockSpec(pipeline_mode=pl.Buffered(1)) usable on this jax/TPU?
# Single-buffering the grid-invariant weights halves their VMEM footprint.
# ---------------------------------------------------------------------------
@functools.lru_cache(maxsize=1)
def _single_buffer_weight_mode():
    def probe_kernel(a_ref, w_ref, o_ref):
        o_ref[...] = a_ref[...] + w_ref[...]

    try:
        w_spec = pl.BlockSpec((8, 128), lambda i: (0, 0),
                              pipeline_mode=pl.Buffered(1))
        f = pl.pallas_call(
            probe_kernel,
            out_shape=jax.ShapeDtypeStruct((16, 128), jnp.float32),
            grid=(2,),
            in_specs=[pl.BlockSpec((8, 128), lambda i: (i, 0)), w_spec],
            out_specs=pl.BlockSpec((8, 128), lambda i: (i, 0)),
            compiler_params=pltpu.CompilerParams(
                dimension_semantics=("parallel",)),
        )
        jax.block_until_ready(
            f(jnp.zeros((16, 128), jnp.float32),
              jnp.ones((8, 128), jnp.float32)))
        return pl.Buffered(1)
    except Exception:
        return None   # fall back to default double-buffering


# ---------------------------------------------------------------------------
# Fused MLP kernel: y = act_{L-1}(...act_0(x @ W0 + s0) @ W1 + s1 ...)
# ---------------------------------------------------------------------------
def _fused_mlp_kernel(x_ref, *refs, n_layers, act_flags, compute_dtype):
    # refs = (w_0, shift_0, w_1, shift_1, ..., w_{L-1}, shift_{L-1}, o_ref)
    o_ref = refs[-1]
    y = x_ref[...]                                            # (tb, Din_p) bf16
    for l in range(n_layers):
        w = refs[2 * l][...]                                  # (din_p, dout_p) bf16
        shift = refs[2 * l + 1][...]                          # (1, dout_p) f32
        # MXU with bf16 operands, f32 accumulation; shift added in f32.
        y = jnp.dot(y, w, preferred_element_type=jnp.float32) + shift
        if act_flags[l]:
            y = jnp.maximum(y, 0.0)                           # ReLU on the VPU
        if l + 1 < n_layers:
            y = y.astype(compute_dtype)                       # bf16 operand for next MXU pass
    o_ref[...] = y.astype(o_ref.dtype)                        # lane-dense store


# ---------------------------------------------------------------------------
# One-time parameter prep: fold eval-mode BN, pad to 128 lanes, cast to bf16
# ---------------------------------------------------------------------------
def prepare_params(params, *, final_layer, compute_dtype=jnp.bfloat16, eps=1e-5):
    n_layers = len(params)
    dims = [int(params[0]["w"].shape[0])] + [int(p["w"].shape[1]) for p in params]
    dims_p = [_round_up(d, 128) for d in dims]

    flat_weights = []
    act_flags = []
    for idx, p in enumerate(params):
        is_last = idx == n_layers - 1
        skip_post = final_layer and is_last
        w = p["w"].astype(jnp.float32)            # (din, dout), already W^T layout
        b = p["b"].astype(jnp.float32)            # (dout,)
        if (not skip_post) and ("bn_gamma" in p):
            # Fold eval-mode BN in f32, cast to bf16 last (precision).
            inv_std = 1.0 / jnp.sqrt(p["bn_var"].astype(jnp.float32) + eps)
            scale = p["bn_gamma"].astype(jnp.float32) * inv_std
            w = w * scale[None, :]
            b = b * scale + (p["bn_beta"] - p["bn_mean"] * scale)
        act_flags.append(not skip_post)
        # dropout: identity in eval mode

        din_p, dout_p = dims_p[idx], dims_p[idx + 1]
        w_p = jnp.zeros((din_p, dout_p), jnp.float32).at[:w.shape[0], :w.shape[1]].set(w)
        b_p = jnp.zeros((1, dout_p), jnp.float32).at[0, :b.shape[0]].set(b)
        flat_weights.append(w_p.astype(compute_dtype))   # bf16 MXU operand
        flat_weights.append(b_p)                         # shift stays f32

    return {
        "flat_weights": tuple(jax.device_put(a) for a in flat_weights),
        "dims": tuple(dims),
        "dims_p": tuple(dims_p),
        "act_flags": tuple(bool(a) for a in act_flags),
        "compute_dtype": compute_dtype,
        "weight_pipeline_mode": _single_buffer_weight_mode(),
    }


# ---------------------------------------------------------------------------
# Per-call forward: pad x, one fused pallas_call, slice result
# ---------------------------------------------------------------------------
def linear_block_forward(x, prep, *, batch_tile=512):
    B, Din = x.shape
    dims, dims_p = prep["dims"], prep["dims_p"]
    assert Din == dims[0]
    n_layers = len(prep["act_flags"])
    cdt = prep["compute_dtype"]
    wmode = prep["weight_pipeline_mode"]
    flat_weights = prep["flat_weights"]

    # Batch tiling: multiples of 16 (bf16 sublane packing); big tiles amortize
    # the ~0.35us/step overhead; >=2 tiles for big batches so both v7x
    # TensorCores get work from the "parallel" batch axis.
    B16 = _round_up(B, 16)
    tb = min(_round_up(batch_tile, 16), B16)
    if B16 >= 512 and B16 // tb < 2:
        tb = _round_up((B16 + 1) // 2, 16)
    B_p = _round_up(B16, tb)
    grid = (B_p // tb,)

    # Pad/cast x per call; padded rows/lanes are zero and are sliced off below.
    x_p = jnp.zeros((B_p, dims_p[0]), cdt).at[:B, :Din].set(x.astype(cdt))

    def const_spec(shape):
        if wmode is None:
            return pl.BlockSpec(shape, lambda i: (0, 0))
        return pl.BlockSpec(shape, lambda i: (0, 0), pipeline_mode=wmode)

    in_specs = [pl.BlockSpec((tb, dims_p[0]), lambda i: (i, 0))]
    for l in range(n_layers):
        din_p, dout_p = dims_p[l], dims_p[l + 1]
        in_specs.append(const_spec((din_p, dout_p)))   # weight, resident across tiles
        in_specs.append(const_spec((1, dout_p)))       # shift, resident across tiles

    out_dim_p = dims_p[-1]
    out_itemsize = jnp.dtype(x.dtype).itemsize

    # Explicit VMEM budget from the actual buffers (+headroom) so the compiler
    # isn't capped by the 16/32 MiB scoped default on v5e / v6e-v7x.
    weight_bytes = sum(int(a.size) * a.dtype.itemsize for a in flat_weights)
    wbuf = 1 if wmode is not None else 2
    x_tile_bytes = tb * dims_p[0] * jnp.dtype(cdt).itemsize
    o_tile_bytes = tb * out_dim_p * out_itemsize
    interm_bytes = 3 * tb * max(dims_p) * 4            # f32 intermediates + casts
    need = wbuf * weight_bytes + 2 * (x_tile_bytes + o_tile_bytes) + interm_bytes
    vmem_limit = int(min(100 * 2**20, max(2 * need, 16 * 2**20)))

    flops = sum(2 * B_p * dims_p[l] * dims_p[l + 1] for l in range(n_layers))
    bytes_accessed = (int(x_p.size) * x_p.dtype.itemsize + weight_bytes
                      + B_p * out_dim_p * out_itemsize)

    kernel = functools.partial(_fused_mlp_kernel, n_layers=n_layers,
                               act_flags=prep["act_flags"], compute_dtype=cdt)
    out_p = pl.pallas_call(
        kernel,
        out_shape=jax.ShapeDtypeStruct((B_p, out_dim_p), x.dtype),
        grid=grid,
        in_specs=in_specs,
        out_specs=pl.BlockSpec((tb, out_dim_p), lambda i: (i, 0)),
        compiler_params=pltpu.CompilerParams(
            dimension_semantics=("parallel",),        # batch axis -> both TCs on v7x
            vmem_limit_bytes=vmem_limit),
        cost_estimate=pl.CostEstimate(flops=flops, transcendentals=0,
                                      bytes_accessed=bytes_accessed),
    )(x_p, *flat_weights)

    return out_p[:B, :dims[-1]]


# ---------------------------------------------------------------------------
# Deterministic parameter construction (PyTorch-style uniform init)
# ---------------------------------------------------------------------------
def make_params(key, nodes, batch_norm_momentum, final_layer):
    params = []
    n_layers = len(nodes) - 1
    for idx in range(1, len(nodes)):
        din, dout = nodes[idx - 1], nodes[idx]
        key, k_w, k_b, k_m, k_v = jax.random.split(key, 5)
        bound = 1.0 / jnp.sqrt(jnp.float32(din))
        p = {
            # stored pre-transposed: (din, dout)
            "w": jax.random.uniform(k_w, (din, dout), jnp.float32, -bound, bound),
            "b": jax.random.uniform(k_b, (dout,), jnp.float32, -bound, bound),
        }
        is_last = (idx == n_layers)
        if batch_norm_momentum > 0.0 and not (final_layer and is_last):
            p["bn_gamma"] = jnp.ones((dout,), jnp.float32)
            p["bn_beta"] = jnp.zeros((dout,), jnp.float32)
            p["bn_mean"] = 0.1 * jax.random.normal(k_m, (dout,), jnp.float32)
            p["bn_var"] = 1.0 + 0.05 * jax.random.uniform(k_v, (dout,), jnp.float32)
        params.append(p)
    return params


# Pure-JAX f32 reference (module semantics, no Pallas, no padding).
def reference_forward(x, params, *, final_layer):
    n_layers = len(params)
    for idx, p in enumerate(params):
        is_last = (idx == n_layers - 1)
        skip_post = final_layer and is_last
        x = x @ p["w"] + p["b"]
        if not skip_post:
            if "bn_gamma" in p:
                x = (x - p["bn_mean"]) / jnp.sqrt(p["bn_var"] + 1e-5) \
                    * p["bn_gamma"] + p["bn_beta"]
            x = jnp.maximum(x, 0.0)
    return x


if __name__ == "__main__":
    key = jax.random.PRNGKey(0)
    nodes = [32, 64, 64, 16]       # LinearBlock(nodes=...)
    batch = 8
    batch_norm_momentum = 0.1
    final_layer = True

    key, k_x, k_p = jax.random.split(key, 3)
    x = jax.random.normal(k_x, (batch, nodes[0]), jnp.float32)
    params = make_params(k_p, nodes, batch_norm_momentum, final_layer)

    # One-time prep (BN fold + pad + bf16 cast), hoisted out of the call path.
    prep = prepare_params(params, final_layer=final_layer)

    fwd = jax.jit(lambda inp: linear_block_forward(inp, prep))
    out = jax.block_until_ready(fwd(x))

    ref = reference_forward(x, params, final_layer=final_layer)
    assert out.shape == (batch, nodes[-1])
    # bf16 MXU operands with f32 accumulation: compare at bf16-level tolerance.
    assert jnp.allclose(out, ref, atol=3e-2, rtol=3e-2), "mismatch vs reference"

    print("KERNEL_OK")
</pallas_src>

<mosaic_0001>
module attributes {stable_mosaic.version = 11 : i64} {
  func.func @probe_kernel(%arg0: i32, %arg1: memref<8x128xf32, #tpu.memory_space<vmem>>, %arg2: memref<8x128xf32, #tpu.memory_space<vmem>>, %arg3: memref<8x128xf32, #tpu.memory_space<vmem>>) attributes {dimension_semantics = [#tpu.dimension_semantics<parallel>], iteration_bounds = array<i64: 2>, scalar_prefetch = 0 : i64, scratch_operands = 0 : i64, tpu.core_type = #tpu.core_type<tc>, window_params = [{transform_indices = @transform_0, window_bounds = array<i64: 8, 128>}, {pipeline_mode = #tpu.pipeline_mode<synchronous>, transform_indices = @transform_1, window_bounds = array<i64: 8, 128>}, {transform_indices = @transform_2, window_bounds = array<i64: 8, 128>}]} {
    %c0 = arith.constant 0 : index
    %c0_0 = arith.constant 0 : index
    %0 = vector.load %arg1[%c0, %c0_0] : memref<8x128xf32, #tpu.memory_space<vmem>>, vector<8x128xf32>
    %c0_1 = arith.constant 0 : index
    %c0_2 = arith.constant 0 : index
    %1 = vector.load %arg2[%c0_1, %c0_2] : memref<8x128xf32, #tpu.memory_space<vmem>>, vector<8x128xf32>
    %2 = arith.addf %0, %1 : vector<8x128xf32>
    %c0_3 = arith.constant 0 : index
    %c0_4 = arith.constant 0 : index
    %3 = vector.load %arg3[%c0_3, %c0_4] : memref<8x128xf32, #tpu.memory_space<vmem>>, vector<8x128xf32>
    tpu.vector_store %arg3[%c0_3, %c0_4], %2 {strides = array<i32>} : memref<8x128xf32, #tpu.memory_space<vmem>>, vector<8x128xf32>,
    return
  }
  func.func @transform_0(%arg0: i32) -> (i32, i32) {
    %c0_i32 = arith.constant 0 : i32
    %c0_i32_0 = arith.constant 0 : i32
    return %arg0, %c0_i32 : i32, i32
  }
  func.func @transform_1(%arg0: i32) -> (i32, i32) {
    %c0_i32 = arith.constant 0 : i32
    %c0_i32_0 = arith.constant 0 : i32
    %c0_i32_1 = arith.constant 0 : i32
    return %c0_i32, %c0_i32_0 : i32, i32
  }
  func.func @transform_2(%arg0: i32) -> (i32, i32) {
    %c0_i32 = arith.constant 0 : i32
    %c0_i32_0 = arith.constant 0 : i32
    return %arg0, %c0_i32 : i32, i32
  }
}

module attributes {stable_mosaic.version = 11 : i64} {
  func.func @_fused_mlp_kernel(%arg0: i32, %arg1: memref<16x128xbf16, #tpu.memory_space<vmem>>, %arg2: memref<128x128xbf16, #tpu.memory_space<vmem>>, %arg3: memref<1x128xf32, #tpu.memory_space<vmem>>, %arg4: memref<128x128xbf16, #tpu.memory_space<vmem>>, %arg5: memref<1x128xf32, #tpu.memory_space<vmem>>, %arg6: memref<128x128xbf16, #tpu.memory_space<vmem>>, %arg7: memref<1x128xf32, #tpu.memory_space<vmem>>, %arg8: memref<16x128xf32, #tpu.memory_space<vmem>>) attributes {dimension_semantics = [#tpu.dimension_semantics<parallel>], iteration_bounds = array<i64: 1>, scalar_prefetch = 0 : i64, scratch_operands = 0 : i64, tpu.core_type = #tpu.core_type<tc>, window_params = [{transform_indices = @transform_0, window_bounds = array<i64: 16, 128>}, {pipeline_mode = #tpu.pipeline_mode<synchronous>, transform_indices = @transform_1, window_bounds = array<i64: 128, 128>}, {pipeline_mode = #tpu.pipeline_mode<synchronous>, transform_indices = @transform_2, window_bounds = array<i64: 1, 128>}, {pipeline_mode = #tpu.pipeline_mode<synchronous>, transform_indices = @transform_3, window_bounds = array<i64: 128, 128>}, {pipeline_mode = #tpu.pipeline_mode<synchronous>, transform_indices = @transform_4, window_bounds = array<i64: 1, 128>}, {pipeline_mode = #tpu.pipeline_mode<synchronous>, transform_indices = @transform_5, window_bounds = array<i64: 128, 128>}, {pipeline_mode = #tpu.pipeline_mode<synchronous>, transform_indices = @transform_6, window_bounds = array<i64: 1, 128>}, {transform_indices = @transform_7, window_bounds = array<i64: 16, 128>}]} {
    %c0 = arith.constant 0 : index
    %c0_0 = arith.constant 0 : index
    %0 = vector.load %arg1[%c0, %c0_0] : memref<16x128xbf16, #tpu.memory_space<vmem>>, vector<16x128xbf16>
    %c0_1 = arith.constant 0 : index
    %c0_2 = arith.constant 0 : index
    %1 = vector.load %arg2[%c0_1, %c0_2] : memref<128x128xbf16, #tpu.memory_space<vmem>>, vector<128x128xbf16>
    %c0_3 = arith.constant 0 : index
    %c0_4 = arith.constant 0 : index
    %2 = vector.load %arg3[%c0_3, %c0_4] : memref<1x128xf32, #tpu.memory_space<vmem>>, vector<1x128xf32>
    %cst = arith.constant dense<0.000000e+00> : vector<16x128xf32>
    %3 = tpu.matmul %0, %1, %cst {dimension_numbers = #tpu.dot_dimension_numbers<[1], [0], [0], [1], [0, 0, 1, 1], [], []>} : vector<16x128xbf16>, vector<128x128xbf16>, vector<16x128xf32> -> vector<16x128xf32>
    %4 = vector.broadcast %2 : vector<1x128xf32> to vector<16x128xf32>
    %5 = arith.addf %3, %4 : vector<16x128xf32>
    %cst_5 = arith.constant 0.000000e+00 : f32
    %6 = vector.broadcast %cst_5 : f32 to vector<16x128xf32>
    %7 = arith.maximumf %5, %6 : vector<16x128xf32>
    %8 = arith.truncf %7 : vector<16x128xf32> to vector<16x128xbf16>
    %c0_6 = arith.constant 0 : index
    %c0_7 = arith.constant 0 : index
    %9 = vector.load %arg4[%c0_6, %c0_7] : memref<128x128xbf16, #tpu.memory_space<vmem>>, vector<128x128xbf16>
    %c0_8 = arith.constant 0 : index
    %c0_9 = arith.constant 0 : index
    %10 = vector.load %arg5[%c0_8, %c0_9] : memref<1x128xf32, #tpu.memory_space<vmem>>, vector<1x128xf32>
    %cst_10 = arith.constant dense<0.000000e+00> : vector<16x128xf32>
    %11 = tpu.matmul %8, %9, %cst_10 {dimension_numbers = #tpu.dot_dimension_numbers<[1], [0], [0], [1], [0, 0, 1, 1], [], []>} : vector<16x128xbf16>, vector<128x128xbf16>, vector<16x128xf32> -> vector<16x128xf32>
    %12 = vector.broadcast %10 : vector<1x128xf32> to vector<16x128xf32>
    %13 = arith.addf %11, %12 : vector<16x128xf32>
    %cst_11 = arith.constant 0.000000e+00 : f32
    %14 = vector.broadcast %cst_11 : f32 to vector<16x128xf32>
    %15 = arith.maximumf %13, %14 : vector<16x128xf32>
    %16 = arith.truncf %15 : vector<16x128xf32> to vector<16x128xbf16>
    %c0_12 = arith.constant 0 : index
    %c0_13 = arith.constant 0 : index
    %17 = vector.load %arg6[%c0_12, %c0_13] : memref<128x128xbf16, #tpu.memory_space<vmem>>, vector<128x128xbf16>
    %c0_14 = arith.constant 0 : index
    %c0_15 = arith.constant 0 : index
    %18 = vector.load %arg7[%c0_14, %c0_15] : memref<1x128xf32, #tpu.memory_space<vmem>>, vector<1x128xf32>
    %cst_16 = arith.constant dense<0.000000e+00> : vector<16x128xf32>
    %19 = tpu.matmul %16, %17, %cst_16 {dimension_numbers = #tpu.dot_dimension_numbers<[1], [0], [0], [1], [0, 0, 1, 1], [], []>} : vector<16x128xbf16>, vector<128x128xbf16>, vector<16x128xf32> -> vector<16x128xf32>
    %20 = vector.broadcast %18 : vector<1x128xf32> to vector<16x128xf32>
    %21 = arith.addf %19, %20 : vector<16x128xf32>
    %c0_17 = arith.constant 0 : index
    %c0_18 = arith.constant 0 : index
    %22 = vector.load %arg8[%c0_17, %c0_18] : memref<16x128xf32, #tpu.memory_space<vmem>>, vector<16x128xf32>
    tpu.vector_store %arg8[%c0_17, %c0_18], %21 {strides = array<i32>} : memref<16x128xf32, #tpu.memory_space<vmem>>, vector<16x128xf32>,
    return
  }
  func.func @transform_0(%arg0: i32) -> (i32, i32) {
    %c0_i32 = arith.constant 0 : i32
    %c0_i32_0 = arith.constant 0 : i32
    return %arg0, %c0_i32 : i32, i32
  }
  func.func @transform_1(%arg0: i32) -> (i32, i32) {
    %c0_i32 = arith.constant 0 : i32
    %c0_i32_0 = arith.constant 0 : i32
    %c0_i32_1 = arith.constant 0 : i32
    return %c0_i32, %c0_i32_0 : i32, i32
  }
  func.func @transform_2(%arg0: i32) -> (i32, i32) {
    %c0_i32 = arith.constant 0 : i32
    %c0_i32_0 = arith.constant 0 : i32
    %c0_i32_1 = arith.constant 0 : i32
    return %c0_i32, %c0_i32_0 : i32, i32
  }
  func.func @transform_3(%arg0: i32) -> (i32, i32) {
    %c0_i32 = arith.constant 0 : i32
    %c0_i32_0 = arith.constant 0 : i32
    %c0_i32_1 = arith.constant 0 : i32
    return %c0_i32, %c0_i32_0 : i32, i32
  }
  func.func @transform_4(%arg0: i32) -> (i32, i32) {
    %c0_i32 = arith.constant 0 : i32
    %c0_i32_0 = arith.constant 0 : i32
    %c0_i32_1 = arith.constant 0 : i32
    return %c0_i32, %c0_i32_0 : i32, i32
  }
  func.func @transform_5(%arg0: i32) -> (i32, i32) {
    %c0_i32 = arith.constant 0 : i32
    %c0_i32_0 = arith.constant 0 : i32
    %c0_i32_1 = arith.constant 0 : i32
    return %c0_i32, %c0_i32_0 : i32, i32
  }
  func.func @transform_6(%arg0: i32) -> (i32, i32) {
    %c0_i32 = arith.constant 0 : i32
    %c0_i32_0 = arith.constant 0 : i32
    %c0_i32_1 = arith.constant 0 : i32
    return %c0_i32, %c0_i32_0 : i32, i32
  }
  func.func @transform_7(%arg0: i32) -> (i32, i32) {
    %c0_i32 = arith.constant 0 : i32
    %c0_i32_0 = arith.constant 0 : i32
    return %arg0, %c0_i32 : i32, i32
  }
}

</mosaic_0001>

<llo_original>
// kernel: tpu_custom_call.1
$region0: #{tpu_custom_call.1}
  #allocation0 [shape = 'u32[]', space=smem, size = 0x4, offset = 0x4, fixed_abs, tag = 'smem constant byte address 0x4 - core index']
  #allocation1 [shape = 'u32[72,128]{1,0:T(1,128)}', space=vmem, size = 0x9000, scoped, tag = 'internal scratch']
  %s0 = inlined_call_operand.hbm [shape: f32[16,128], index: 0, kind: input, shape index: {}]
  %s1 = inlined_call_operand.hbm [shape: f32[8,128], index: 1, kind: input, shape index: {}]
  %s2 = inlined_call_operand.hbm [shape: f32[16,128], index: 2, kind: output, shape index: {}]
  %s3 = sld [smem:[#allocation0]]
  $region49: #{tpu_custom_call.1} parent=0
    _
  %s5 = ssub.s32 1, %s3
  %s6 = scalar_select 0, %s5, %s3
  $region1: #{tpu_custom_call.1} parent=0
    #allocation2 [shape = 'u8[8192]{0}', space=vmem, size = 0x2000, scoped, tag = 'input window, operand 0']
    #allocation3 [shape = 's32[2]{0}', space=sflag, size = 0x8, scoped, tag = 'scoped memory for tpu_custom_call.1']
    #allocation4 [shape = 's32[2]{0}', space=sflag, size = 0x8, scoped, tag = 'scoped memory for tpu_custom_call.1']
    #allocation5 [shape = 'u8[4096]{0}', space=vmem, size = 0x1000, scoped, tag = 'input window, operand 1, single buffered']
    #allocation6 [shape = 's32[1]{0}', space=sflag, size = 0x4, scoped, tag = 'scoped memory for tpu_custom_call.1']
    #allocation7 [shape = 'u8[8192]{0}', space=vmem, size = 0x2000, scoped, tag = 'output window, operand 0']
    %7 = vsyncpa [#allocation3], 0
    %s8 = scalar_lea.sflag [#allocation3], 1
    %9 = vsyncpa %s8, 0
    %10 = vsyncpa [#allocation6], 0
    %11 = vsyncpa [#allocation4], 0
    %s12 = scalar_lea.sflag [#allocation4], 1
    %13 = vsyncpa %s12, 0
    loop: start=0, step=1, limit=4
    $region2: #{tpu_custom_call.1} parent=1 // loop_pre_header
      _
    $region3: #{tpu_custom_call.1} parent=1 // loop_header
      %s15 = sphi 0, %s19
      %p16 = scmp.ge.s32.totalorder %s15, 4
      %s25 = sphi 0, %s27
      %s28 = sphi 0, %s25
      %s29 = sphi 0, %s28
      %s45 = sphi 0, %s29
      %s49 = sphi 0, %s49
      %s51 = sphi 0, %s49
      %s52 = sphi 0, %s51
      %s66 = sphi 0, %s52
      %s72 = sphi 0, %s74
      %s75 = sphi 0, %s72
      %s76 = sphi 0, %s75
      %s92 = sphi 0, %s76
    $region4: #{tpu_custom_call.1} parent=1 // loop_header_branch
      %18 = sbr.rel (%p16) target = $region8
    $region5: #{tpu_custom_call.1} parent=1 // loop_body
      %s20 = ssub.s32 %s15, 1
      %s21 = ssub.s32 %s15, 2
      %s22 = sadd.s32 %s15, 1
      %s23 = ssub.s32 %s15, %s22
      %p24 = scmp.eq.s32.totalorder %s23, 0
      %s26 = sadd.s32 %s25, 1
      %s27 = scalar_select %p24, %s25, %s26
      %p30 = pneg %p24
      %p31 = scmp.eq.s32.totalorder %s15, 1
      %p32 = por %p30, %p31
      %p33 = scmp.ne.s32.totalorder %s25, %s28
      %p34 = scmp.eq.s32.totalorder %s15, 0
      %p35 = por %p33, %p34
      %p36 = scmp.ne.s32.totalorder %s25, %s28
      %p37 = scmp.eq.s32.totalorder %s20, 1
      %p38 = por %p36, %p37
      %p39 = scmp.ne.s32.totalorder %s28, %s29
      %p40 = scmp.eq.s32.totalorder %s20, 0
      %p41 = por %p39, %p40
      %p42 = scmp.ne.s32.totalorder %s28, %s29
      %p43 = scmp.eq.s32.totalorder %s21, 1
      %p44 = por %p42, %p43
      %p46 = scmp.ne.s32.totalorder %s29, %s45
      %p47 = scmp.eq.s32.totalorder %s21, 0
      %p48 = por %p46, %p47
      %s50 = sadd.s32 %s49, 1
      %p53 = scmp.eq.s32.totalorder %s15, 1
      %p54 = scmp.ne.s32.totalorder %s49, %s51
      %p55 = scmp.eq.s32.totalorder %s15, 0
      %p56 = por %p54, %p55
      %p57 = scmp.ne.s32.totalorder %s49, %s51
      %p58 = scmp.eq.s32.totalorder %s20, 1
      %p59 = por %p57, %p58
      %p60 = scmp.ne.s32.totalorder %s51, %s52
      %p61 = scmp.eq.s32.totalorder %s20, 0
      %p62 = por %p60, %p61
      %p63 = scmp.ne.s32.totalorder %s51, %s52
      %p64 = scmp.eq.s32.totalorder %s21, 1
      %p65 = por %p63, %p64
      %p67 = scmp.ne.s32.totalorder %s52, %s66
      %p68 = scmp.eq.s32.totalorder %s21, 0
      %p69 = por %p67, %p68
      %s70 = ssub.s32 %s15, %s22
      %p71 = scmp.eq.s32.totalorder %s70, 0
      %s73 = sadd.s32 %s72, 1
      %s74 = scalar_select %p71, %s72, %s73
      %p77 = pneg %p71
      %p78 = scmp.eq.s32.totalorder %s15, 1
      %p79 = por %p77, %p78
      %p80 = scmp.ne.s32.totalorder %s72, %s75
      %p81 = scmp.eq.s32.totalorder %s15, 0
      %p82 = por %p80, %p81
      %p83 = scmp.ne.s32.totalorder %s72, %s75
      %p84 = scmp.eq.s32.totalorder %s20, 1
      %p85 = por %p83, %p84
      %p86 = scmp.ne.s32.totalorder %s75, %s76
      %p87 = scmp.eq.s32.totalorder %s20, 0
      %p88 = por %p86, %p87
      %p89 = scmp.ne.s32.totalorder %s75, %s76
      %p90 = scmp.eq.s32.totalorder %s21, 1
      %p91 = por %p89, %p90
      %p93 = scmp.ne.s32.totalorder %s76, %s92
      %p94 = scmp.eq.s32.totalorder %s21, 0
      %p95 = por %p93, %p94
      %p96 = scmp.le.s32.totalorder 1, %s15
      %p97 = scmp.lt.s32.totalorder %s15, 3
      %p98 = pnand %p96, %p97
      %p99 = pneg %p98
      // Predicated region
      $region9: #{tpu_custom_call.1} parent=5 // pred_check
        _
      $region10: #{tpu_custom_call.1} parent=5 // pred_check_branch
        %101 = sbr.rel (%p98) target = $region12
      $region11: #{tpu_custom_call.1} parent=5 // pred_region
        %s102 = ssub.s32 %s15, 1
        // Predicated region
        $region13: #{tpu_custom_call.1} parent=11 // pred_check
          %p103 = pneg %p62
        $region14: #{tpu_custom_call.1} parent=11 // pred_check_branch
          %105 = sbr.rel (%p103) target = $region16
        $region15: #{tpu_custom_call.1} parent=11 // pred_region
          %107 = vsyncadd [#allocation6], 0
          %s109 = sshll.u32 %s1, 4
          %s110 = int_to_ptr.hbm [resolvable:$true] %s109
          %s111 = sshll.u32 [#allocation5], 4
          %s112 = int_to_ptr.vmem [resolvable:$true] %s111
          %114 = dma.hbm_to_vmem [thread:$0]  %s110, 128, %s112, [#allocation6]
        $region16: #{tpu_custom_call.1} parent=11 // pred_fallthru
          _
      $region12: #{tpu_custom_call.1} parent=5 // pred_fallthru
        _
      %p115 = scmp.lt.s32.totalorder %s15, 2
      // Predicated region
      $region17: #{tpu_custom_call.1} parent=5 // pred_check
        %p116 = pneg %p115
      $region18: #{tpu_custom_call.1} parent=5 // pred_check_branch
        %118 = sbr.rel (%p116) target = $region20
      $region19: #{tpu_custom_call.1} parent=5 // pred_region
        // Predicated region
        $region21: #{tpu_custom_call.1} parent=19 // pred_check
          %p119 = pneg %p35
        $region22: #{tpu_custom_call.1} parent=19 // pred_check_branch
          %121 = sbr.rel (%p119) target = $region24
        $region23: #{tpu_custom_call.1} parent=19 // pred_region
          %s122 = sand.u32 %s25, 1
          %s123 = scalar_lea.sflag [#allocation3], %s122
          %s124 = sand.u32 %s25, 1
          %s125 = smul.addr %s124, 8
          %s126 = scalar_lea.vmem [#allocation2], %s125
          %128 = vsyncadd %s123, 0
          %s129 = smul.addr %s15, 8
          %s130 = scalar_lea.hbm %s0, %s129
          %s132 = sshll.u32 %s130, 4
          %s133 = int_to_ptr.hbm [resolvable:$true] %s132
          %s134 = sshll.u32 %s126, 4
          %s135 = int_to_ptr.vmem [resolvable:$true] %s134
          %137 = dma.hbm_to_vmem [thread:$0]  %s133, 128, %s135, %s123
        $region24: #{tpu_custom_call.1} parent=19 // pred_fallthru
          _
      $region20: #{tpu_custom_call.1} parent=5 // pred_fallthru
        _
      %p138 = scmp.le.s32.totalorder 1, %s15
      %p139 = scmp.lt.s32.totalorder %s15, 3
      %p140 = pnand %p138, %p139
      %p141 = pneg %p140
      // Predicated region
      $region25: #{tpu_custom_call.1} parent=5 // pred_check
        _
      $region26: #{tpu_custom_call.1} parent=5 // pred_check_branch
        %143 = sbr.rel (%p140) target = $region28
      $region27: #{tpu_custom_call.1} parent=5 // pred_region
        %s144 = ssub.s32 %s15, 1
        %s145 = sand.u32 %s28, 1
        %s146 = scalar_lea.sflag [#allocation3], %s145
        %s147 = sand.u32 %s28, 1
        %s148 = smul.addr %s147, 8
        %s149 = scalar_lea.vmem [#allocation2], %s148
        // Predicated region
        $region29: #{tpu_custom_call.1} parent=27 // pred_check
          %p150 = pneg %p41
        $region30: #{tpu_custom_call.1} parent=27 // pred_check_branch
          %152 = sbr.rel (%p150) target = $region32
        $region31: #{tpu_custom_call.1} parent=27 // pred_region
          %154 = dma.done %s146, 128
        $region32: #{tpu_custom_call.1} parent=27 // pred_fallthru
          _
        // Predicated region
        $region33: #{tpu_custom_call.1} parent=27 // pred_check
          %p155 = pneg %p62
        $region34: #{tpu_custom_call.1} parent=27 // pred_check_branch
          %157 = sbr.rel (%p155) target = $region36
        $region35: #{tpu_custom_call.1} parent=27 // pred_region
          %159 = dma.done [#allocation6], 128
        $region36: #{tpu_custom_call.1} parent=27 // pred_fallthru
          _
        %s160 = sand.u32 %s28, 1
        %s161 = scalar_lea.sflag [#allocation3], %s160
        %s162 = sand.u32 %s28, 1
        %s163 = smul.addr %s162, 8
        %s164 = scalar_lea.vmem [#allocation2], %s163
        %p165 = pneg %p41
        %p166 = pneg %p38
        %p167 = pneg %p62
        %p168 = pneg %p59
        %p169 = pneg %p88
        %p170 = pneg %p85
        %s171 = sand.u32 %s75, 1
        %s172 = scalar_lea.sflag [#allocation4], %s171
        %s173 = sand.u32 %s75, 1
        %s174 = smul.addr %s173, 8
        %s175 = scalar_lea.vmem [#allocation7], %s174
        %v176 = vld [vmem:[%s149] sm:$0xff]
        %v177 = vld [vmem:[#allocation5] sm:$0xff]
        %v178 = vadd.f32 %v176, %v177
        %179 = vst [vmem:[%s175] sm:$0xff] %v178
        %s180 = sand.u32 %s75, 1
        %s181 = scalar_lea.sflag [#allocation4], %s180
        %s182 = sand.u32 %s75, 1
        %s183 = smul.addr %s182, 8
        %s184 = scalar_lea.vmem [#allocation7], %s183
        // Predicated region
        $region37: #{tpu_custom_call.1} parent=27 // pred_check
          %p185 = pneg %p85
        $region38: #{tpu_custom_call.1} parent=27 // pred_check_branch
          %187 = sbr.rel (%p185) target = $region40
        $region39: #{tpu_custom_call.1} parent=27 // pred_region
          %189 = vsyncadd %s181, 0
          %s190 = smul.addr %s20, 8
          %s191 = scalar_lea.hbm %s2, %s190
          %s193 = sshll.u32 %s184, 4
          %s194 = int_to_ptr.vmem [resolvable:$true] %s193
          %s195 = sshll.u32 %s191, 4
          %s196 = int_to_ptr.hbm [resolvable:$true] %s195
          %198 = dma.vmem_to_hbm [thread:$0]  %s194, 128, %s196, %s181
        $region40: #{tpu_custom_call.1} parent=27 // pred_fallthru
          _
      $region28: #{tpu_custom_call.1} parent=5 // pred_fallthru
        _
      %p199 = scmp.le.s32.totalorder 2, %s15
      // Predicated region
      $region41: #{tpu_custom_call.1} parent=5 // pred_check
        %p200 = pneg %p199
      $region42: #{tpu_custom_call.1} parent=5 // pred_check_branch
        %202 = sbr.rel (%p200) target = $region44
      $region43: #{tpu_custom_call.1} parent=5 // pred_region
        %s203 = ssub.s32 %s15, 2
        // Predicated region
        $region45: #{tpu_custom_call.1} parent=43 // pred_check
          %p204 = pneg %p91
        $region46: #{tpu_custom_call.1} parent=43 // pred_check_branch
          %206 = sbr.rel (%p204) target = $region48
        $region47: #{tpu_custom_call.1} parent=43 // pred_region
          %s207 = sand.u32 %s76, 1
          %s208 = scalar_lea.sflag [#allocation4], %s207
          %s209 = sand.u32 %s76, 1
          %s210 = smul.addr %s209, 8
          %s211 = scalar_lea.vmem [#allocation7], %s210
          %213 = dma.done %s208, 128
        $region48: #{tpu_custom_call.1} parent=43 // pred_fallthru
          _
      $region44: #{tpu_custom_call.1} parent=5 // pred_fallthru
        _
    $region6: #{tpu_custom_call.1} parent=1 // loop_footer
      %s19 = sadd.s32 1, %s15
    $region7: #{tpu_custom_call.1} parent=1 // loop_footer_branch
      %14 = sbr.rel target = $region3
    $region8: #{tpu_custom_call.1} parent=1 // loop_exit
      _
    %214 = vsyncpa [#allocation3], 1
    %s215 = scalar_lea.sflag [#allocation3], 1
    %216 = vsyncpa %s215, 1
    %217 = vsyncpa [#allocation6], 1
    %218 = vsyncpa [#allocation4], 1
    %s219 = scalar_lea.sflag [#allocation4], 1
    %220 = vsyncpa %s219, 1

// kernel: _lambda_.1
$region0: #{_lambda_.1}
  #allocation0 [shape = 'u32[]', space=smem, size = 0x4, offset = 0x4, fixed_abs, tag = 'smem constant byte address 0x4 - core index']
  #allocation1 [shape = 'u32[72,128]{1,0:T(1,128)}', space=vmem, size = 0x9000, scoped, tag = 'internal scratch']
  %s0 = inlined_call_operand.vmem [shape: bf16[16,128], index: 0, kind: input, shape index: {}]
  %s1 = inlined_call_operand.hbm [shape: bf16[128,128], index: 1, kind: input, shape index: {}]
  %s2 = inlined_call_operand.vmem [shape: f32[1,128], index: 2, kind: input, shape index: {}]
  %s3 = inlined_call_operand.hbm [shape: bf16[128,128], index: 3, kind: input, shape index: {}]
  %s4 = inlined_call_operand.vmem [shape: f32[1,128], index: 4, kind: input, shape index: {}]
  %s5 = inlined_call_operand.hbm [shape: bf16[128,128], index: 5, kind: input, shape index: {}]
  %s6 = inlined_call_operand.vmem [shape: f32[1,128], index: 6, kind: input, shape index: {}]
  %s7 = inlined_call_operand.vmem [shape: f32[16,128], index: 7, kind: output, shape index: {}]
  %s8 = sld [smem:[#allocation0]]
  $region50: #{_lambda_.1} parent=0
    _
  %s10 = ssub.s32 1, %s8
  %s11 = scalar_select 0, %s10, %s8
  $region1: #{_lambda_.1} parent=0
    #allocation2 [shape = 'u8[32768]{0}', space=vmem, size = 0x8000, scoped, tag = 'input window, operand 1, single buffered']
    #allocation3 [shape = 's32[1]{0}', space=sflag, size = 0x4, scoped, tag = 'scoped memory for _lambda_.1']
    #allocation4 [shape = 'u8[32768]{0}', space=vmem, size = 0x8000, scoped, tag = 'input window, operand 3, single buffered']
    #allocation5 [shape = 's32[1]{0}', space=sflag, size = 0x4, scoped, tag = 'scoped memory for _lambda_.1']
    #allocation6 [shape = 'u8[32768]{0}', space=vmem, size = 0x8000, scoped, tag = 'input window, operand 5, single buffered']
    %12 = vsyncpa [#allocation3], 0
    %13 = vsyncpa [#allocation5], 0
    // Predicated region
    $region2: #{_lambda_.1} parent=1 // pred_check
      _
    $region3: #{_lambda_.1} parent=1 // pred_check_branch
      %15 = sbr.rel (0) target = $region5
    $region4: #{_lambda_.1} parent=1 // pred_region
      _
    $region5: #{_lambda_.1} parent=1 // pred_fallthru
      _
    // Predicated region
    $region6: #{_lambda_.1} parent=1 // pred_check
      _
    $region7: #{_lambda_.1} parent=1 // pred_check_branch
      %17 = sbr.rel (0) target = $region9
    $region8: #{_lambda_.1} parent=1 // pred_region
      %19 = vsyncadd [#allocation3], 0
      %s20 = sshll.u32 %s1, 4
      %s21 = int_to_ptr.hbm [resolvable:$true] %s20
      %s22 = sshll.u32 [#allocation2], 4
      %s23 = int_to_ptr.vmem [resolvable:$true] %s22
      %28 = dma.hbm_to_vmem [thread:$0]  %s21, 1024, %s23, [#allocation3], 64, 64, 4
    $region9: #{_lambda_.1} parent=1 // pred_fallthru
      _
    // Predicated region
    $region10: #{_lambda_.1} parent=1 // pred_check
      _
    $region11: #{_lambda_.1} parent=1 // pred_check_branch
      %30 = sbr.rel (0) target = $region13
    $region12: #{_lambda_.1} parent=1 // pred_region
      _
    $region13: #{_lambda_.1} parent=1 // pred_fallthru
      _
    // Predicated region
    $region14: #{_lambda_.1} parent=1 // pred_check
      _
    $region15: #{_lambda_.1} parent=1 // pred_check_branch
      %32 = sbr.rel (0) target = $region17
    $region16: #{_lambda_.1} parent=1 // pred_region
      %34 = vsyncadd [#allocation5], 0
      %s35 = sshll.u32 %s3, 4
      %s36 = int_to_ptr.hbm [resolvable:$true] %s35
      %s37 = sshll.u32 [#allocation4], 4
      %s38 = int_to_ptr.vmem [resolvable:$true] %s37
      %43 = dma.hbm_to_vmem [thread:$0]  %s36, 1024, %s38, [#allocation5], 64, 64, 4
    $region17: #{_lambda_.1} parent=1 // pred_fallthru
      _
    // Predicated region
    $region18: #{_lambda_.1} parent=1 // pred_check
      _
    $region19: #{_lambda_.1} parent=1 // pred_check_branch
      %45 = sbr.rel (0) target = $region21
    $region20: #{_lambda_.1} parent=1 // pred_region
      _
    $region21: #{_lambda_.1} parent=1 // pred_fallthru
      _
    // Predicated region
    $region22: #{_lambda_.1} parent=1 // pred_check
      _
    $region23: #{_lambda_.1} parent=1 // pred_check_branch
      %47 = sbr.rel (0) target = $region25
    $region24: #{_lambda_.1} parent=1 // pred_region
      %49 = vsyncadd [#allocation5], 0
      %s50 = sshll.u32 %s5, 4
      %s51 = int_to_ptr.hbm [resolvable:$true] %s50
      %s52 = sshll.u32 [#allocation6], 4
      %s53 = int_to_ptr.vmem [resolvable:$true] %s52
      %58 = dma.hbm_to_vmem [thread:$0]  %s51, 1024, %s53, [#allocation5], 64, 64, 4
    $region25: #{_lambda_.1} parent=1 // pred_fallthru
      _
    // Predicated region
    $region26: #{_lambda_.1} parent=1 // pred_check
      _
    $region27: #{_lambda_.1} parent=1 // pred_check_branch
      %60 = sbr.rel (0) target = $region29
    $region28: #{_lambda_.1} parent=1 // pred_region
      _
    $region29: #{_lambda_.1} parent=1 // pred_fallthru
      _
    // Predicated region
    $region30: #{_lambda_.1} parent=1 // pred_check
      _
    $region31: #{_lambda_.1} parent=1 // pred_check_branch
      %62 = sbr.rel (0) target = $region33
    $region32: #{_lambda_.1} parent=1 // pred_region
      %64 = dma.done [#allocation3], 1024
    $region33: #{_lambda_.1} parent=1 // pred_fallthru
      _
    // Predicated region
    $region34: #{_lambda_.1} parent=1 // pred_check
      _
    $region35: #{_lambda_.1} parent=1 // pred_check_branch
      %66 = sbr.rel (0) target = $region37
    $region36: #{_lambda_.1} parent=1 // pred_region
      %68 = dma.done [#allocation5], 1024
    $region37: #{_lambda_.1} parent=1 // pred_fallthru
      _
    // Predicated region
    $region38: #{_lambda_.1} parent=1 // pred_check
      _
    $region39: #{_lambda_.1} parent=1 // pred_check_branch
      %70 = sbr.rel (0) target = $region41
    $region40: #{_lambda_.1} parent=1 // pred_region
      %72 = dma.done [#allocation5], 1024
    $region41: #{_lambda_.1} parent=1 // pred_fallthru
      _
    %v73 = vld [vmem:[%s0] sm:$0xf]
    %v74 = vld [vmem:[%s0 + $0x4] sm:$0xf]
    %v75 = vld [vmem:[#allocation2] sm:$0xf]
    %v76 = vld [vmem:[#allocation2 + $0x4] sm:$0xf]
    %v77 = vld [vmem:[#allocation2 + $0x8] sm:$0xf]
    %v78 = vld [vmem:[#allocation2 + $0xc] sm:$0xf]
    %v79 = vld [vmem:[#allocation2 + $0x10] sm:$0xf]
    %v80 = vld [vmem:[#allocation2 + $0x14] sm:$0xf]
    %v81 = vld [vmem:[#allocation2 + $0x18] sm:$0xf]
    %v82 = vld [vmem:[#allocation2 + $0x1c] sm:$0xf]
    %v83 = vld [vmem:[#allocation2 + $0x20] sm:$0xf]
    %v84 = vld [vmem:[#allocation2 + $0x24] sm:$0xf]
    %v85 = vld [vmem:[#allocation2 + $0x28] sm:$0xf]
    %v86 = vld [vmem:[#allocation2 + $0x2c] sm:$0xf]
    %v87 = vld [vmem:[#allocation2 + $0x30] sm:$0xf]
    %v88 = vld [vmem:[#allocation2 + $0x34] sm:$0xf]
    %v89 = vld [vmem:[#allocation2 + $0x38] sm:$0xf]
    %v90 = vld [vmem:[#allocation2 + $0x3c] sm:$0xf]
    %v91 = vld [vmem:[%s2] sm:$0x1]
    %v93 = vperm.slane %v91, 0
    %v97 = vunpack.c.l.b16 %v73
    %v98 = vunpack.c.l.b16 %v74
    %v99 = vpack.c.b16 %v98, %v97
    %v117 = vunpack.c.l.b16 %v75
    %v118 = vunpack.c.l.b16 %v76
    %v119 = vunpack.c.l.b16 %v77
    %v120 = vunpack.c.l.b16 %v78
    %v121 = vunpack.c.l.b16 %v79
    %v122 = vunpack.c.l.b16 %v80
    %v123 = vunpack.c.l.b16 %v81
    %v124 = vunpack.c.l.b16 %v82
    %v125 = vunpack.c.l.b16 %v83
    %v126 = vunpack.c.l.b16 %v84
    %v127 = vunpack.c.l.b16 %v85
    %v128 = vunpack.c.l.b16 %v86
    %v129 = vunpack.c.l.b16 %v87
    %v130 = vunpack.c.l.b16 %v88
    %v131 = vunpack.c.l.b16 %v89
    %v132 = vunpack.c.l.b16 %v90
    %v133 = vpack.c.b16 %v118, %v117
    %v134 = vpack.c.b16 %v120, %v119
    %v135 = vpack.c.b16 %v122, %v121
    %v136 = vpack.c.b16 %v124, %v123
    %v137 = vpack.c.b16 %v126, %v125
    %v138 = vpack.c.b16 %v128, %v127
    %v139 = vpack.c.b16 %v130, %v129
    %v140 = vpack.c.b16 %v132, %v131
    %149 = vmatpush.bf16.msra.mxu0 %v140
    %150 = vmatpush.bf16.msra.mxu0 %v139
    %151 = vmatpush.bf16.msra.mxu0 %v138
    %152 = vmatpush.bf16.msra.mxu0 %v137
    %153 = vmatpush.bf16.msra.mxu0 %v136
    %154 = vmatpush.bf16.msra.mxu0 %v135
    %155 = vmatpush.bf16.msra.mxu0 %v134
    %156 = vmatpush.bf16.msra.mxu0 %v133
    %157 = vmatmul.bf16.gmra.mxu0 %v99
    %v158 = vpop.f32.mrf.mxu0
    %v159 = vadd.f32 %v93, %v158
    %v160 = vpop.f32.mrf.mxu0
    %v161 = vadd.f32 %v93, %v160
    %162 = vdwg.mxu0
    %v163 = vmax.f32 %v159, 0.0
    %v164 = vmax.f32 %v161, 0.0
    %v165 = vpack.c.bf16 %v164, %v163
    %v166 = vld [vmem:[#allocation4] sm:$0xf]
    %v167 = vld [vmem:[#allocation4 + $0x4] sm:$0xf]
    %v168 = vld [vmem:[#allocation4 + $0x8] sm:$0xf]
    %v169 = vld [vmem:[#allocation4 + $0xc] sm:$0xf]
    %v170 = vld [vmem:[#allocation4 + $0x10] sm:$0xf]
    %v171 = vld [vmem:[#allocation4 + $0x14] sm:$0xf]
    %v172 = vld [vmem:[#allocation4 + $0x18] sm:$0xf]
    %v173 = vld [vmem:[#allocation4 + $0x1c] sm:$0xf]
    %v174 = vld [vmem:[#allocation4 + $0x20] sm:$0xf]
    %v175 = vld [vmem:[#allocation4 + $0x24] sm:$0xf]
    %v176 = vld [vmem:[#allocation4 + $0x28] sm:$0xf]
    %v177 = vld [vmem:[#allocation4 + $0x2c] sm:$0xf]
    %v178 = vld [vmem:[#allocation4 + $0x30] sm:$0xf]
    %v179 = vld [vmem:[#allocation4 + $0x34] sm:$0xf]
    %v180 = vld [vmem:[#allocation4 + $0x38] sm:$0xf]
    %v181 = vld [vmem:[#allocation4 + $0x3c] sm:$0xf]
    %v182 = vld [vmem:[%s4] sm:$0x1]
    %v184 = vperm.slane %v182, 0
    %v202 = vunpack.c.l.b16 %v166
    %v203 = vunpack.c.l.b16 %v167
    %v204 = vunpack.c.l.b16 %v168
    %v205 = vunpack.c.l.b16 %v169
    %v206 = vunpack.c.l.b16 %v170
    %v207 = vunpack.c.l.b16 %v171
    %v208 = vunpack.c.l.b16 %v172
    %v209 = vunpack.c.l.b16 %v173
    %v210 = vunpack.c.l.b16 %v174
    %v211 = vunpack.c.l.b16 %v175
    %v212 = vunpack.c.l.b16 %v176
    %v213 = vunpack.c.l.b16 %v177
    %v214 = vunpack.c.l.b16 %v178
    %v215 = vunpack.c.l.b16 %v179
    %v216 = vunpack.c.l.b16 %v180
    %v217 = vunpack.c.l.b16 %v181
    %v218 = vpack.c.b16 %v203, %v202
    %v219 = vpack.c.b16 %v205, %v204
    %v220 = vpack.c.b16 %v207, %v206
    %v221 = vpack.c.b16 %v209, %v208
    %v222 = vpack.c.b16 %v211, %v210
    %v223 = vpack.c.b16 %v213, %v212
    %v224 = vpack.c.b16 %v215, %v214
    %v225 = vpack.c.b16 %v217, %v216
    %234 = vmatpush.bf16.msra.mxu0 %v225
    %235 = vmatpush.bf16.msra.mxu0 %v224
    %236 = vmatpush.bf16.msra.mxu0 %v223
    %237 = vmatpush.bf16.msra.mxu0 %v222
    %238 = vmatpush.bf16.msra.mxu0 %v221
    %239 = vmatpush.bf16.msra.mxu0 %v220
    %240 = vmatpush.bf16.msra.mxu0 %v219
    %241 = vmatpush.bf16.msra.mxu0 %v218
    %242 = vmatmul.bf16.gmra.mxu0 %v165
    %v243 = vpop.f32.mrf.mxu0
    %v244 = vadd.f32 %v184, %v243
    %v245 = vpop.f32.mrf.mxu0
    %v246 = vadd.f32 %v184, %v245
    %247 = vdwg.mxu0
    %v248 = vmax.f32 %v244, 0.0
    %v249 = vmax.f32 %v246, 0.0
    %v250 = vpack.c.bf16 %v249, %v248
    %v251 = vld [vmem:[#allocation6] sm:$0xf]
    %v252 = vld [vmem:[#allocation6 + $0x4] sm:$0xf]
    %v253 = vld [vmem:[#allocation6 + $0x8] sm:$0xf]
    %v254 = vld [vmem:[#allocation6 + $0xc] sm:$0xf]
    %v255 = vld [vmem:[#allocation6 + $0x10] sm:$0xf]
    %v256 = vld [vmem:[#allocation6 + $0x14] sm:$0xf]
    %v257 = vld [vmem:[#allocation6 + $0x18] sm:$0xf]
    %v258 = vld [vmem:[#allocation6 + $0x1c] sm:$0xf]
    %v259 = vld [vmem:[#allocation6 + $0x20] sm:$0xf]
    %v260 = vld [vmem:[#allocation6 + $0x24] sm:$0xf]
    %v261 = vld [vmem:[#allocation6 + $0x28] sm:$0xf]
    %v262 = vld [vmem:[#allocation6 + $0x2c] sm:$0xf]
    %v263 = vld [vmem:[#allocation6 + $0x30] sm:$0xf]
    %v264 = vld [vmem:[#allocation6 + $0x34] sm:$0xf]
    %v265 = vld [vmem:[#allocation6 + $0x38] sm:$0xf]
    %v266 = vld [vmem:[#allocation6 + $0x3c] sm:$0xf]
    %v267 = vld [vmem:[%s6] sm:$0x1]
    %v269 = vperm.slane %v267, 0
    %v287 = vunpack.c.l.b16 %v251
    %v288 = vunpack.c.l.b16 %v252
    %v289 = vunpack.c.l.b16 %v253
    %v290 = vunpack.c.l.b16 %v254
    %v291 = vunpack.c.l.b16 %v255
    %v292 = vunpack.c.l.b16 %v256
    %v293 = vunpack.c.l.b16 %v257
    %v294 = vunpack.c.l.b16 %v258
    %v295 = vunpack.c.l.b16 %v259
    %v296 = vunpack.c.l.b16 %v260
    %v297 = vunpack.c.l.b16 %v261
    %v298 = vunpack.c.l.b16 %v262
    %v299 = vunpack.c.l.b16 %v263
    %v300 = vunpack.c.l.b16 %v264
    %v301 = vunpack.c.l.b16 %v265
    %v302 = vunpack.c.l.b16 %v266
    %v303 = vpack.c.b16 %v288, %v287
    %v304 = vpack.c.b16 %v290, %v289
    %v305 = vpack.c.b16 %v292, %v291
    %v306 = vpack.c.b16 %v294, %v293
    %v307 = vpack.c.b16 %v296, %v295
    %v308 = vpack.c.b16 %v298, %v297
    %v309 = vpack.c.b16 %v300, %v299
    %v310 = vpack.c.b16 %v302, %v301
    %319 = vmatpush.bf16.msra.mxu0 %v310
    %320 = vmatpush.bf16.msra.mxu0 %v309
    %321 = vmatpush.bf16.msra.mxu0 %v308
    %322 = vmatpush.bf16.msra.mxu0 %v307
    %323 = vmatpush.bf16.msra.mxu0 %v306
    %324 = vmatpush.bf16.msra.mxu0 %v305
    %325 = vmatpush.bf16.msra.mxu0 %v304
    %326 = vmatpush.bf16.msra.mxu0 %v303
    %327 = vmatmul.bf16.gmra.mxu0 %v250
    %v328 = vpop.f32.mrf.mxu0
    %v329 = vadd.f32 %v269, %v328
    %v330 = vpop.f32.mrf.mxu0
    %v331 = vadd.f32 %v269, %v330
    %332 = vdwg.mxu0
    %333 = vst [vmem:[%s7] sm:$0xff] %v329
    %334 = vst [vmem:[%s7 + $0x8] sm:$0xff] %v331
    // Predicated region
    $region42: #{_lambda_.1} parent=1 // pred_check
      _
    $region43: #{_lambda_.1} parent=1 // pred_check_branch
      %336 = sbr.rel (0) target = $region45
    $region44: #{_lambda_.1} parent=1 // pred_region
      _
    $region45: #{_lambda_.1} parent=1 // pred_fallthru
      _
    // Predicated region
    $region46: #{_lambda_.1} parent=1 // pred_check
      _
    $region47: #{_lambda_.1} parent=1 // pred_check_branch
      %338 = sbr.rel (0) target = $region49
    $region48: #{_lambda_.1} parent=1 // pred_region
      _
    $region49: #{_lambda_.1} parent=1 // pred_fallthru
      _
    %339 = vsyncpa [#allocation3], 1
    %340 = vsyncpa [#allocation5], 1

</llo_original>
